<compile_context>
chip_gen: v7x
topology: tpu7x:2x2x1
jax: 0.10.0
libtpu: 0.0.40
codegen_flags: <defaults>
</compile_context>

<pallas_src>
import jax
import jax.numpy as jnp
from jax.experimental import pallas as pl
from jax.experimental.pallas import tpu as pltpu


def _round_up(x, m):
    return (x + m - 1) // m * m


def _sigmoid(z):
    # exp and the (exact) reciprocal both run on the EUP slot, off the VPU.
    return pl.reciprocal(1.0 + jnp.exp(-z))


# ---------------------------------------------------------------------------
# Kernel
# ---------------------------------------------------------------------------
def mlp_kernel(x_ref, w1_ref, b1_ref, w2_ref, b2_ref, y_ref):
    """One batch tile: y = sigmoid(sigmoid(x @ w1 + b1) @ w2 + b2)."""
    # In-kernel bf16 cast of the x tile (no separate XLA pad/cast pass over x).
    x = x_ref[...].astype(w1_ref.dtype)
    h = _sigmoid(
        jnp.dot(x, w1_ref[...], preferred_element_type=jnp.float32) + b1_ref[...]
    )
    y = _sigmoid(
        jnp.dot(h.astype(w2_ref.dtype), w2_ref[...],
                preferred_element_type=jnp.float32) + b2_ref[...]
    )
    # Drop zero-padded output columns in-kernel; y_ref is the true (tile_b, M)
    # block, so no padded writeback and no wrapper-side slice are needed.
    y_ref[...] = y[:, : y_ref.shape[-1]].astype(y_ref.dtype)


# ---------------------------------------------------------------------------
# One-time parameter preparation (hoisted out of the per-forward path)
# ---------------------------------------------------------------------------
def prepare_params(w1, b1, w2, b2, *, lane_align=128):
    """Pad + cast the weights once.

    w1: (N, H), b1: (1, H), w2: (H, M), b2: (1, M)   (already (in, out) layout).
    Hidden / output feature dims are zero-padded to `lane_align` (128; use 256
    for large layers on v6e/v7x).  Padding is numerically neutral: padded
    hidden units get pre-activation 0 -> sigmoid 0.5, but multiply zero rows of
    w2; padded output columns are sliced off in-kernel.  The contraction dim N
    is left unpadded so x needs no padding at all.
    """
    N, H = w1.shape
    M = w2.shape[1]
    h_pad = _round_up(H, lane_align)
    m_pad = _round_up(M, lane_align)
    w1p = jnp.pad(w1, ((0, 0), (0, h_pad - H))).astype(jnp.bfloat16)
    b1p = jnp.pad(b1, ((0, 0), (0, h_pad - H))).astype(jnp.float32)
    w2p = jnp.pad(w2, ((0, h_pad - H), (0, m_pad - M))).astype(jnp.bfloat16)
    b2p = jnp.pad(b2, ((0, 0), (0, m_pad - M))).astype(jnp.float32)
    return w1p, b1p, w2p, b2p, M


# ---------------------------------------------------------------------------
# VMEM accounting (per-buffer exact sum + headroom, generation-aware cap)
# ---------------------------------------------------------------------------
def _physical_vmem_bytes():
    try:
        return int(pltpu.get_tpu_info().vmem_capacity_bytes)
    except Exception:
        return 64 << 20  # conservative default (v7x per-TensorCore VMEM)


def _vmem_limit_bytes(tile_b, n, h_pad, m_pad, m_out, weight_bufs):
    x_bufs = 2 * tile_b * n * 4                                   # f32 x tiles (double-buffered)
    w_bufs = weight_bufs * (n * h_pad * 2 + h_pad * m_pad * 2
                            + (h_pad + m_pad) * 4)                # bf16 weights + f32 biases
    y_bufs = 2 * tile_b * m_out * 4                               # output tiles (double-buffered)
    interm = (tile_b * n * 2                                      # bf16 copy of x
              + tile_b * h_pad * (4 + 2)                          # f32 hidden + bf16 staging
              + tile_b * m_pad * 4)                               # f32 padded y before slice
    need = x_bufs + w_bufs + y_bufs + interm
    cap = _physical_vmem_bytes() * 3 // 4
    return int(min(max(need * 3 // 2, 16 << 20), cap))


# ---------------------------------------------------------------------------
# pallas_call builder + forward wrapper
# ---------------------------------------------------------------------------
def _build_mlp_call(batch, n, h_pad, m_pad, m_out, tile_b, num_tiles,
                    single_buffer_weights):
    # Weights/biases have constant index_maps -> fetched from HBM once and kept
    # VMEM-resident across all batch tiles.  Buffered(1) drops the (useless)
    # second pipeline buffer for them.
    wkw = {"pipeline_mode": pl.Buffered(1)} if single_buffer_weights else {}
    in_specs = [
        pl.BlockSpec((tile_b, n), lambda i: (i, 0)),             # x: tiled over batch
        pl.BlockSpec((n, h_pad), lambda i: (0, 0), **wkw),       # w1 (resident)
        pl.BlockSpec((1, h_pad), lambda i: (0, 0), **wkw),       # b1 (resident)
        pl.BlockSpec((h_pad, m_pad), lambda i: (0, 0), **wkw),   # w2 (resident)
        pl.BlockSpec((1, m_pad), lambda i: (0, 0), **wkw),       # b2 (resident)
    ]
    out_spec = pl.BlockSpec((tile_b, m_out), lambda i: (i, 0))
    weight_bufs = 1 if single_buffer_weights else 2
    return pl.pallas_call(
        mlp_kernel,
        out_shape=jax.ShapeDtypeStruct((batch, m_out), jnp.float32),
        grid_spec=pl.GridSpec(grid=(num_tiles,), in_specs=in_specs,
                              out_specs=out_spec),
        compiler_params=pltpu.CompilerParams(
            dimension_semantics=("parallel",),  # batch tiles independent (2 TCs on v7x)
            vmem_limit_bytes=_vmem_limit_bytes(tile_b, n, h_pad, m_pad, m_out,
                                               weight_bufs),
        ),
    )


def mlp_forward(x, params, *, block_b=512):
    """x: (B, N) f32; params from prepare_params() -> (B, M) f32."""
    w1p, b1p, w2p, b2p, m_out = params
    B, N = x.shape
    assert w1p.shape[0] == N, "feature dim mismatch between x and w1"
    h_pad = w1p.shape[1]
    m_pad = w2p.shape[1]

    # Balanced batch tiling: split B into near-equal 8-row-aligned tiles instead
    # of padding up to a full block (e.g. B=300 -> 2 x 152, not 256 + 44-in-256).
    # Ragged last tiles are handled by Pallas partial-block masking, so x is
    # passed completely unpadded and uncast.
    if B <= 8:
        tile_b, num_tiles = B, 1
    else:
        num_splits = pl.cdiv(B, block_b)
        tile_b = _round_up(pl.cdiv(B, num_splits), 8)
        while tile_b > B:  # keep every tile within the array (B not mult. of 8)
            num_splits += 1
            tile_b = _round_up(pl.cdiv(B, num_splits), 8)
        num_tiles = pl.cdiv(B, tile_b)

    args = (x, w1p, b1p, w2p, b2p)
    try:
        y = _build_mlp_call(B, N, h_pad, m_pad, m_out, tile_b, num_tiles,
                            single_buffer_weights=True)(*args)
        return jax.block_until_ready(y)
    except Exception:
        # Fallback for jax versions that reject pipeline_mode=pl.Buffered(1).
        return _build_mlp_call(B, N, h_pad, m_pad, m_out, tile_b, num_tiles,
                               single_buffer_weights=False)(*args)


# ---------------------------------------------------------------------------
# Reference + init
# ---------------------------------------------------------------------------
def mlp_reference(x, w1, b1, w2, b2):
    h = jax.nn.sigmoid(x @ w1 + b1)
    return jax.nn.sigmoid(h @ w2 + b2)


def init_params(key, N, H, M):
    """Deterministic init mimicking torch.nn.Linear (uniform +-1/sqrt(fan_in))."""
    k1, k2, k3, k4 = jax.random.split(key, 4)
    bound1 = 1.0 / jnp.sqrt(N)
    bound2 = 1.0 / jnp.sqrt(H)
    # Stored already transposed: (in, out)
    w1 = jax.random.uniform(k1, (N, H), jnp.float32, -bound1, bound1)
    b1 = jax.random.uniform(k2, (1, H), jnp.float32, -bound1, bound1)
    w2 = jax.random.uniform(k3, (H, M), jnp.float32, -bound2, bound2)
    b2 = jax.random.uniform(k4, (1, M), jnp.float32, -bound2, bound2)
    return w1, b1, w2, b2


if __name__ == "__main__":
    # Original script: N input features, H = N + 1 hidden units, M = 1 output.
    N = 8
    H = N + 1
    M = 1

    key = jax.random.PRNGKey(0)
    kx, kp = jax.random.split(key)
    w1, b1, w2, b2 = init_params(kp, N, H, M)
    params = prepare_params(w1, b1, w2, b2)   # one-time pad + bf16 cast

    # B=8: single tile.  B=300: balanced 2x152 tiling with a ragged last tile.
    for B in (8, 300):
        xb = jax.random.normal(jax.random.fold_in(kx, B), (B, N), jnp.float32)
        y = jax.block_until_ready(mlp_forward(xb, params))
        y_ref = mlp_reference(xb, w1, b1, w2, b2)
        assert y.shape == (B, M)
        # bf16 MXU inputs (f32 accumulation, exact reciprocal) vs f32 reference.
        assert jnp.allclose(y, y_ref, atol=2e-2), f"mismatch vs reference (B={B})"

    print("KERNEL_OK")
</pallas_src>

<mosaic_0001>
module attributes {stable_mosaic.version = 11 : i64} {
  func.func @mlp_kernel(%arg0: i32, %arg1: memref<8x8xf32, #tpu.memory_space<vmem>>, %arg2: memref<8x128xbf16, #tpu.memory_space<vmem>>, %arg3: memref<1x128xf32, #tpu.memory_space<vmem>>, %arg4: memref<128x128xbf16, #tpu.memory_space<vmem>>, %arg5: memref<1x128xf32, #tpu.memory_space<vmem>>, %arg6: memref<8x1xf32, #tpu.memory_space<vmem>>) attributes {dimension_semantics = [#tpu.dimension_semantics<parallel>], iteration_bounds = array<i64: 1>, scalar_prefetch = 0 : i64, scratch_operands = 0 : i64, tpu.core_type = #tpu.core_type<tc>, window_params = [{transform_indices = @transform_0, window_bounds = array<i64: 8, 8>}, {pipeline_mode = #tpu.pipeline_mode<synchronous>, transform_indices = @transform_1, window_bounds = array<i64: 8, 128>}, {pipeline_mode = #tpu.pipeline_mode<synchronous>, transform_indices = @transform_2, window_bounds = array<i64: 1, 128>}, {pipeline_mode = #tpu.pipeline_mode<synchronous>, transform_indices = @transform_3, window_bounds = array<i64: 128, 128>}, {pipeline_mode = #tpu.pipeline_mode<synchronous>, transform_indices = @transform_4, window_bounds = array<i64: 1, 128>}, {transform_indices = @transform_5, window_bounds = array<i64: 8, 1>}]} {
    %c0 = arith.constant 0 : index
    %c0_0 = arith.constant 0 : index
    %0 = vector.load %arg1[%c0, %c0_0] : memref<8x8xf32, #tpu.memory_space<vmem>>, vector<8x8xf32>
    %1 = arith.truncf %0 : vector<8x8xf32> to vector<8x8xbf16>
    %c0_1 = arith.constant 0 : index
    %c0_2 = arith.constant 0 : index
    %2 = vector.load %arg2[%c0_1, %c0_2] : memref<8x128xbf16, #tpu.memory_space<vmem>>, vector<8x128xbf16>
    %cst = arith.constant dense<0.000000e+00> : vector<8x128xf32>
    %3 = tpu.matmul %1, %2, %cst {dimension_numbers = #tpu.dot_dimension_numbers<[1], [0], [0], [1], [0, 0, 1, 1], [], []>} : vector<8x8xbf16>, vector<8x128xbf16>, vector<8x128xf32> -> vector<8x128xf32>
    %c0_3 = arith.constant 0 : index
    %c0_4 = arith.constant 0 : index
    %4 = vector.load %arg3[%c0_3, %c0_4] : memref<1x128xf32, #tpu.memory_space<vmem>>, vector<1x128xf32>
    %5 = vector.broadcast %4 : vector<1x128xf32> to vector<8x128xf32>
    %6 = arith.addf %3, %5 : vector<8x128xf32>
    %cst_5 = arith.constant 0.000000e+00 : f32
    %7 = vector.broadcast %cst_5 : f32 to vector<8x128xf32>
    %8 = arith.subf %7, %6 : vector<8x128xf32>
    %9 = math.exp %8 : vector<8x128xf32>
    %cst_6 = arith.constant 1.000000e+00 : f32
    %10 = vector.broadcast %cst_6 : f32 to vector<8x128xf32>
    %11 = arith.addf %10, %9 : vector<8x128xf32>
    %12 = tpu.reciprocal %11 : vector<8x128xf32> -> vector<8x128xf32>
    %13 = arith.truncf %12 : vector<8x128xf32> to vector<8x128xbf16>
    %c0_7 = arith.constant 0 : index
    %c0_8 = arith.constant 0 : index
    %14 = vector.load %arg4[%c0_7, %c0_8] : memref<128x128xbf16, #tpu.memory_space<vmem>>, vector<128x128xbf16>
    %cst_9 = arith.constant dense<0.000000e+00> : vector<8x128xf32>
    %15 = tpu.matmul %13, %14, %cst_9 {dimension_numbers = #tpu.dot_dimension_numbers<[1], [0], [0], [1], [0, 0, 1, 1], [], []>} : vector<8x128xbf16>, vector<128x128xbf16>, vector<8x128xf32> -> vector<8x128xf32>
    %c0_10 = arith.constant 0 : index
    %c0_11 = arith.constant 0 : index
    %16 = vector.load %arg5[%c0_10, %c0_11] : memref<1x128xf32, #tpu.memory_space<vmem>>, vector<1x128xf32>
    %17 = vector.broadcast %16 : vector<1x128xf32> to vector<8x128xf32>
    %18 = arith.addf %15, %17 : vector<8x128xf32>
    %cst_12 = arith.constant 0.000000e+00 : f32
    %19 = vector.broadcast %cst_12 : f32 to vector<8x128xf32>
    %20 = arith.subf %19, %18 : vector<8x128xf32>
    %21 = math.exp %20 : vector<8x128xf32>
    %cst_13 = arith.constant 1.000000e+00 : f32
    %22 = vector.broadcast %cst_13 : f32 to vector<8x128xf32>
    %23 = arith.addf %22, %21 : vector<8x128xf32>
    %24 = tpu.reciprocal %23 : vector<8x128xf32> -> vector<8x128xf32>
    %25 = vector.extract_strided_slice %24 {offsets = [0, 0], sizes = [8, 1], strides = [1, 1]} : vector<8x128xf32> to vector<8x1xf32>
    %c0_14 = arith.constant 0 : index
    %c0_15 = arith.constant 0 : index
    %26 = vector.load %arg6[%c0_14, %c0_15] : memref<8x1xf32, #tpu.memory_space<vmem>>, vector<8x1xf32>
    tpu.vector_store %arg6[%c0_14, %c0_15], %25 {strides = array<i32>} : memref<8x1xf32, #tpu.memory_space<vmem>>, vector<8x1xf32>,
    return
  }
  func.func @transform_0(%arg0: i32) -> (i32, i32) {
    %c0_i32 = arith.constant 0 : i32
    %c0_i32_0 = arith.constant 0 : i32
    return %arg0, %c0_i32 : i32, i32
  }
  func.func @transform_1(%arg0: i32) -> (i32, i32) {
    %c0_i32 = arith.constant 0 : i32
    %c0_i32_0 = arith.constant 0 : i32
    %c0_i32_1 = arith.constant 0 : i32
    return %c0_i32, %c0_i32_0 : i32, i32
  }
  func.func @transform_2(%arg0: i32) -> (i32, i32) {
    %c0_i32 = arith.constant 0 : i32
    %c0_i32_0 = arith.constant 0 : i32
    %c0_i32_1 = arith.constant 0 : i32
    return %c0_i32, %c0_i32_0 : i32, i32
  }
  func.func @transform_3(%arg0: i32) -> (i32, i32) {
    %c0_i32 = arith.constant 0 : i32
    %c0_i32_0 = arith.constant 0 : i32
    %c0_i32_1 = arith.constant 0 : i32
    return %c0_i32, %c0_i32_0 : i32, i32
  }
  func.func @transform_4(%arg0: i32) -> (i32, i32) {
    %c0_i32 = arith.constant 0 : i32
    %c0_i32_0 = arith.constant 0 : i32
    %c0_i32_1 = arith.constant 0 : i32
    return %c0_i32, %c0_i32_0 : i32, i32
  }
  func.func @transform_5(%arg0: i32) -> (i32, i32) {
    %c0_i32 = arith.constant 0 : i32
    %c0_i32_0 = arith.constant 0 : i32
    return %arg0, %c0_i32 : i32, i32
  }
}

module attributes {stable_mosaic.version = 11 : i64} {
  func.func @mlp_kernel(%arg0: i32, %arg1: memref<8x8xf32, #tpu.memory_space<vmem>>, %arg2: memref<8x128xbf16, #tpu.memory_space<vmem>>, %arg3: memref<1x128xf32, #tpu.memory_space<vmem>>, %arg4: memref<128x128xbf16, #tpu.memory_space<vmem>>, %arg5: memref<1x128xf32, #tpu.memory_space<vmem>>, %arg6: memref<8x1xf32, #tpu.memory_space<vmem>>) attributes {dimension_semantics = [#tpu.dimension_semantics<parallel>], iteration_bounds = array<i64: 1>, scalar_prefetch = 0 : i64, scratch_operands = 0 : i64, tpu.core_type = #tpu.core_type<tc>, window_params = [{transform_indices = @transform_0, window_bounds = array<i64: 8, 8>}, {pipeline_mode = #tpu.pipeline_mode<synchronous>, transform_indices = @transform_1, window_bounds = array<i64: 8, 128>}, {pipeline_mode = #tpu.pipeline_mode<synchronous>, transform_indices = @transform_2, window_bounds = array<i64: 1, 128>}, {pipeline_mode = #tpu.pipeline_mode<synchronous>, transform_indices = @transform_3, window_bounds = array<i64: 128, 128>}, {pipeline_mode = #tpu.pipeline_mode<synchronous>, transform_indices = @transform_4, window_bounds = array<i64: 1, 128>}, {transform_indices = @transform_5, window_bounds = array<i64: 8, 1>}]} {
    %c0 = arith.constant 0 : index
    %c0_0 = arith.constant 0 : index
    %0 = vector.load %arg1[%c0, %c0_0] : memref<8x8xf32, #tpu.memory_space<vmem>>, vector<8x8xf32>
    %1 = arith.truncf %0 : vector<8x8xf32> to vector<8x8xbf16>
    %c0_1 = arith.constant 0 : index
    %c0_2 = arith.constant 0 : index
    %2 = vector.load %arg2[%c0_1, %c0_2] : memref<8x128xbf16, #tpu.memory_space<vmem>>, vector<8x128xbf16>
    %cst = arith.constant dense<0.000000e+00> : vector<8x128xf32>
    %3 = tpu.matmul %1, %2, %cst {dimension_numbers = #tpu.dot_dimension_numbers<[1], [0], [0], [1], [0, 0, 1, 1], [], []>} : vector<8x8xbf16>, vector<8x128xbf16>, vector<8x128xf32> -> vector<8x128xf32>
    %c0_3 = arith.constant 0 : index
    %c0_4 = arith.constant 0 : index
    %4 = vector.load %arg3[%c0_3, %c0_4] : memref<1x128xf32, #tpu.memory_space<vmem>>, vector<1x128xf32>
    %5 = vector.broadcast %4 : vector<1x128xf32> to vector<8x128xf32>
    %6 = arith.addf %3, %5 : vector<8x128xf32>
    %cst_5 = arith.constant 0.000000e+00 : f32
    %7 = vector.broadcast %cst_5 : f32 to vector<8x128xf32>
    %8 = arith.subf %7, %6 : vector<8x128xf32>
    %9 = math.exp %8 : vector<8x128xf32>
    %cst_6 = arith.constant 1.000000e+00 : f32
    %10 = vector.broadcast %cst_6 : f32 to vector<8x128xf32>
    %11 = arith.addf %10, %9 : vector<8x128xf32>
    %12 = tpu.reciprocal %11 : vector<8x128xf32> -> vector<8x128xf32>
    %13 = arith.truncf %12 : vector<8x128xf32> to vector<8x128xbf16>
    %c0_7 = arith.constant 0 : index
    %c0_8 = arith.constant 0 : index
    %14 = vector.load %arg4[%c0_7, %c0_8] : memref<128x128xbf16, #tpu.memory_space<vmem>>, vector<128x128xbf16>
    %cst_9 = arith.constant dense<0.000000e+00> : vector<8x128xf32>
    %15 = tpu.matmul %13, %14, %cst_9 {dimension_numbers = #tpu.dot_dimension_numbers<[1], [0], [0], [1], [0, 0, 1, 1], [], []>} : vector<8x128xbf16>, vector<128x128xbf16>, vector<8x128xf32> -> vector<8x128xf32>
    %c0_10 = arith.constant 0 : index
    %c0_11 = arith.constant 0 : index
    %16 = vector.load %arg5[%c0_10, %c0_11] : memref<1x128xf32, #tpu.memory_space<vmem>>, vector<1x128xf32>
    %17 = vector.broadcast %16 : vector<1x128xf32> to vector<8x128xf32>
    %18 = arith.addf %15, %17 : vector<8x128xf32>
    %cst_12 = arith.constant 0.000000e+00 : f32
    %19 = vector.broadcast %cst_12 : f32 to vector<8x128xf32>
    %20 = arith.subf %19, %18 : vector<8x128xf32>
    %21 = math.exp %20 : vector<8x128xf32>
    %cst_13 = arith.constant 1.000000e+00 : f32
    %22 = vector.broadcast %cst_13 : f32 to vector<8x128xf32>
    %23 = arith.addf %22, %21 : vector<8x128xf32>
    %24 = tpu.reciprocal %23 : vector<8x128xf32> -> vector<8x128xf32>
    %25 = vector.extract_strided_slice %24 {offsets = [0, 0], sizes = [8, 1], strides = [1, 1]} : vector<8x128xf32> to vector<8x1xf32>
    %c0_14 = arith.constant 0 : index
    %c0_15 = arith.constant 0 : index
    %26 = vector.load %arg6[%c0_14, %c0_15] : memref<8x1xf32, #tpu.memory_space<vmem>>, vector<8x1xf32>
    tpu.vector_store %arg6[%c0_14, %c0_15], %25 {strides = array<i32>} : memref<8x1xf32, #tpu.memory_space<vmem>>, vector<8x1xf32>,
    return
  }
  func.func @transform_0(%arg0: i32) -> (i32, i32) {
    %c0_i32 = arith.constant 0 : i32
    %c0_i32_0 = arith.constant 0 : i32
    return %arg0, %c0_i32 : i32, i32
  }
  func.func @transform_1(%arg0: i32) -> (i32, i32) {
    %c0_i32 = arith.constant 0 : i32
    %c0_i32_0 = arith.constant 0 : i32
    %c0_i32_1 = arith.constant 0 : i32
    return %c0_i32, %c0_i32_0 : i32, i32
  }
  func.func @transform_2(%arg0: i32) -> (i32, i32) {
    %c0_i32 = arith.constant 0 : i32
    %c0_i32_0 = arith.constant 0 : i32
    %c0_i32_1 = arith.constant 0 : i32
    return %c0_i32, %c0_i32_0 : i32, i32
  }
  func.func @transform_3(%arg0: i32) -> (i32, i32) {
    %c0_i32 = arith.constant 0 : i32
    %c0_i32_0 = arith.constant 0 : i32
    %c0_i32_1 = arith.constant 0 : i32
    return %c0_i32, %c0_i32_0 : i32, i32
  }
  func.func @transform_4(%arg0: i32) -> (i32, i32) {
    %c0_i32 = arith.constant 0 : i32
    %c0_i32_0 = arith.constant 0 : i32
    %c0_i32_1 = arith.constant 0 : i32
    return %c0_i32, %c0_i32_0 : i32, i32
  }
  func.func @transform_5(%arg0: i32) -> (i32, i32) {
    %c0_i32 = arith.constant 0 : i32
    %c0_i32_0 = arith.constant 0 : i32
    return %arg0, %c0_i32 : i32, i32
  }
}

</mosaic_0001>

<llo_original>
// kernel: tpu_custom_call.1
$region0: #{tpu_custom_call.1}
  #allocation0 [shape = 'u32[]', space=smem, size = 0x4, offset = 0x4, fixed_abs, tag = 'smem constant byte address 0x4 - core index']
  #allocation1 [shape = 'u32[144,128]{1,0:T(1,128)}', space=vmem, size = 0x12000, scoped, tag = 'internal scratch']
  %s0 = inlined_call_operand.hbm [shape: f32[8,8], index: 0, kind: input, shape index: {}]
  %s1 = inlined_call_operand.hbm [shape: bf16[8,128], index: 1, kind: input, shape index: {}]
  %s2 = inlined_call_operand.vmem [shape: f32[1,128], index: 2, kind: input, shape index: {}]
  %s3 = inlined_call_operand.hbm [shape: bf16[128,128], index: 3, kind: input, shape index: {}]
  %s4 = inlined_call_operand.vmem [shape: f32[1,128], index: 4, kind: input, shape index: {}]
  %s5 = inlined_call_operand.vmem [shape: f32[8,1], index: 5, kind: output, shape index: {}]
  %s6 = sld [smem:[#allocation0]]
  $region42: #{tpu_custom_call.1} parent=0
    _
  %s8 = ssub.s32 1, %s6
  %s9 = scalar_select 0, %s8, %s6
  $region1: #{tpu_custom_call.1} parent=0
    #allocation2 [shape = 'u8[4096]{0}', space=vmem, size = 0x1000, scoped, tag = 'input window, operand 0, single buffered']
    #allocation3 [shape = 's32[1]{0}', space=sflag, size = 0x4, scoped, tag = 'scoped memory for tpu_custom_call.1']
    #allocation4 [shape = 'u8[2048]{0}', space=vmem, size = 0x800, scoped, tag = 'input window, operand 1, single buffered']
    #allocation5 [shape = 's32[1]{0}', space=sflag, size = 0x4, scoped, tag = 'scoped memory for tpu_custom_call.1']
    #allocation6 [shape = 'u8[32768]{0}', space=vmem, size = 0x8000, scoped, tag = 'input window, operand 3, single buffered']
    %10 = vsyncpa [#allocation3], 0
    %11 = vsyncpa [#allocation5], 0
    // Predicated region
    $region2: #{tpu_custom_call.1} parent=1 // pred_check
      _
    $region3: #{tpu_custom_call.1} parent=1 // pred_check_branch
      %13 = sbr.rel (0) target = $region5
    $region4: #{tpu_custom_call.1} parent=1 // pred_region
      %s15 = ssub.s32 128, 128
      %16 = vsyncadd [#allocation3], %s15
      %s18 = sshll.u32 [#allocation2], 4
      %s19 = int_to_ptr.vmem [resolvable:$true] %s18
      %21 = dma.hbm_to_vmem [thread:$0]  %s0, 128, %s19, [#allocation3]
    $region5: #{tpu_custom_call.1} parent=1 // pred_fallthru
      _
    // Predicated region
    $region6: #{tpu_custom_call.1} parent=1 // pred_check
      _
    $region7: #{tpu_custom_call.1} parent=1 // pred_check_branch
      %23 = sbr.rel (0) target = $region9
    $region8: #{tpu_custom_call.1} parent=1 // pred_region
      %s25 = ssub.s32 64, 64
      %26 = vsyncadd [#allocation5], %s25
      %s28 = sshll.u32 [#allocation4], 4
      %s29 = int_to_ptr.vmem [resolvable:$true] %s28
      %31 = dma.hbm_to_vmem [thread:$0]  %s1, 64, %s29, [#allocation5]
    $region9: #{tpu_custom_call.1} parent=1 // pred_fallthru
      _
    // Predicated region
    $region10: #{tpu_custom_call.1} parent=1 // pred_check
      _
    $region11: #{tpu_custom_call.1} parent=1 // pred_check_branch
      %33 = sbr.rel (0) target = $region13
    $region12: #{tpu_custom_call.1} parent=1 // pred_region
      _
    $region13: #{tpu_custom_call.1} parent=1 // pred_fallthru
      _
    // Predicated region
    $region14: #{tpu_custom_call.1} parent=1 // pred_check
      _
    $region15: #{tpu_custom_call.1} parent=1 // pred_check_branch
      %35 = sbr.rel (0) target = $region17
    $region16: #{tpu_custom_call.1} parent=1 // pred_region
      %s37 = ssub.s32 1024, 1024
      %38 = vsyncadd [#allocation5], %s37
      %s39 = sshll.u32 [#allocation6], 4
      %s40 = int_to_ptr.vmem [resolvable:$true] %s39
      %45 = dma.hbm_to_vmem [thread:$0]  %s3, 1024, %s40, [#allocation5], 64, 64, 4
    $region17: #{tpu_custom_call.1} parent=1 // pred_fallthru
      _
    // Predicated region
    $region18: #{tpu_custom_call.1} parent=1 // pred_check
      _
    $region19: #{tpu_custom_call.1} parent=1 // pred_check_branch
      %47 = sbr.rel (0) target = $region21
    $region20: #{tpu_custom_call.1} parent=1 // pred_region
      _
    $region21: #{tpu_custom_call.1} parent=1 // pred_fallthru
      _
    // Predicated region
    $region22: #{tpu_custom_call.1} parent=1 // pred_check
      _
    $region23: #{tpu_custom_call.1} parent=1 // pred_check_branch
      %49 = sbr.rel (0) target = $region25
    $region24: #{tpu_custom_call.1} parent=1 // pred_region
      %50 = dma.done [#allocation3], 128
    $region25: #{tpu_custom_call.1} parent=1 // pred_fallthru
      _
    // Predicated region
    $region26: #{tpu_custom_call.1} parent=1 // pred_check
      _
    $region27: #{tpu_custom_call.1} parent=1 // pred_check_branch
      %52 = sbr.rel (0) target = $region29
    $region28: #{tpu_custom_call.1} parent=1 // pred_region
      %53 = dma.done [#allocation5], 64
    $region29: #{tpu_custom_call.1} parent=1 // pred_fallthru
      _
    // Predicated region
    $region30: #{tpu_custom_call.1} parent=1 // pred_check
      _
    $region31: #{tpu_custom_call.1} parent=1 // pred_check_branch
      %55 = sbr.rel (0) target = $region33
    $region32: #{tpu_custom_call.1} parent=1 // pred_region
      %56 = dma.done [#allocation5], 1024
    $region33: #{tpu_custom_call.1} parent=1 // pred_fallthru
      _
    %v58 = vld [vmem:[#allocation2] sm:$0xff]
    %v59 = vpack.c.bf16 %v58, %v58
    %v60 = vld [vmem:[#allocation4] sm:$0xf]
    %v61 = vld [vmem:[%s2] sm:$0x1]
    %v63 = vlaneseq
    %v64 = vshrl.u32 %v63, 7
    %v65 = vsub.s32 0, %v64
    %v66 = vrot.slane %v61, %v65
    %vm68 = vcmask 64512
    %v70 = vsel %vm68, %v59, 0
    %vm72 = vcmask 1043456
    %v74 = vsel %vm72, %v60, 0
    %76 = vmatprep.subr.bf16.mxu0 0
    %77 = vmatpush1.bf16.msra.mxu0 %v74
    %78 = vmatprep.subr.bf16.mxu0 0
    %79 = vmatpush1.bf16.msra.mxu0 0
    %80 = vmatprep.subr.bf16.mxu0 0
    %81 = vmatpush1.bf16.msra.mxu0 0
    %82 = vmatprep.subr.bf16.mxu0 0
    %83 = vmatpush1.bf16.msra.mxu0 0
    %84 = vmatprep.subr.bf16.mxu0 0
    %85 = vmatpush1.bf16.msra.mxu0 0
    %86 = vmatprep.subr.bf16.mxu0 0
    %87 = vmatpush1.bf16.msra.mxu0 0
    %88 = vmatprep.subr.bf16.mxu0 0
    %89 = vmatpush1.bf16.msra.mxu0 0
    %90 = vmatprep.subr.bf16.mxu0 0
    %91 = vmatpush1.bf16.msra.mxu0 0
    %92 = vmatprep.subr.bf16.mxu0 0
    %93 = vmatpush1.bf16.msra.mxu0 0
    %94 = vmatprep.subr.bf16.mxu0 0
    %95 = vmatpush1.bf16.msra.mxu0 0
    %96 = vmatprep.subr.bf16.mxu0 0
    %97 = vmatpush1.bf16.msra.mxu0 0
    %98 = vmatprep.subr.bf16.mxu0 0
    %99 = vmatpush1.bf16.msra.mxu0 0
    %100 = vmatprep.subr.bf16.mxu0 0
    %101 = vmatpush1.bf16.msra.mxu0 0
    %102 = vmatprep.subr.bf16.mxu0 0
    %103 = vmatpush1.bf16.msra.mxu0 0
    %104 = vmatprep.subr.bf16.mxu0 0
    %105 = vmatpush1.bf16.msra.mxu0 0
    %106 = vmatprep.subr.bf16.mxu0 0
    %107 = vmatpush1.bf16.msra.mxu0 0
    %108 = vmatprep.mubr.bf16.mxu0 0
    %109 = vmatmul.mubr.bf16.gmra.mrb[0].mxu0 %v70
    %v110 = vpop.f32.mrb[0].mxu0
    %v111 = vadd.f32 %v66, %v110
    %v112 = vpop.f32.mrb[0].mxu0
    %v113 = vpop.f32.mrb[0].mxu0
    %v114 = vpop.f32.mrb[0].mxu0
    %115 = vdwg.mxu0
    %v116 = vsub.f32 0.0, %v111
    %v117 = vmul.f32 %v116, 1.442695
    %v118 = vpow.pop %v117
    %v119 = vadd.f32 %v118, 1.0
    %v120 = vrcp.pop %v119
    %v121 = vpack.c.bf16 %v120, %v120
    %v122 = vld [vmem:[#allocation6] sm:$0xf]
    %v123 = vld [vmem:[#allocation6 + $0x4] sm:$0xf]
    %v124 = vld [vmem:[#allocation6 + $0x8] sm:$0xf]
    %v125 = vld [vmem:[#allocation6 + $0xc] sm:$0xf]
    %v126 = vld [vmem:[#allocation6 + $0x10] sm:$0xf]
    %v127 = vld [vmem:[#allocation6 + $0x14] sm:$0xf]
    %v128 = vld [vmem:[#allocation6 + $0x18] sm:$0xf]
    %v129 = vld [vmem:[#allocation6 + $0x1c] sm:$0xf]
    %v130 = vld [vmem:[#allocation6 + $0x20] sm:$0xf]
    %v131 = vld [vmem:[#allocation6 + $0x24] sm:$0xf]
    %v132 = vld [vmem:[#allocation6 + $0x28] sm:$0xf]
    %v133 = vld [vmem:[#allocation6 + $0x2c] sm:$0xf]
    %v134 = vld [vmem:[#allocation6 + $0x30] sm:$0xf]
    %v135 = vld [vmem:[#allocation6 + $0x34] sm:$0xf]
    %v136 = vld [vmem:[#allocation6 + $0x38] sm:$0xf]
    %v137 = vld [vmem:[#allocation6 + $0x3c] sm:$0xf]
    %v138 = vld [vmem:[%s4] sm:$0x1]
    %v140 = vlaneseq
    %v141 = vshrl.u32 %v140, 7
    %v142 = vsub.s32 0, %v141
    %v143 = vrot.slane %v138, %v142
    %v161 = vunpack.c.l.b16 %v122
    %v162 = vunpack.c.l.b16 %v123
    %v163 = vunpack.c.l.b16 %v124
    %v164 = vunpack.c.l.b16 %v125
    %v165 = vunpack.c.l.b16 %v126
    %v166 = vunpack.c.l.b16 %v127
    %v167 = vunpack.c.l.b16 %v128
    %v168 = vunpack.c.l.b16 %v129
    %v169 = vunpack.c.l.b16 %v130
    %v170 = vunpack.c.l.b16 %v131
    %v171 = vunpack.c.l.b16 %v132
    %v172 = vunpack.c.l.b16 %v133
    %v173 = vunpack.c.l.b16 %v134
    %v174 = vunpack.c.l.b16 %v135
    %v175 = vunpack.c.l.b16 %v136
    %v176 = vunpack.c.l.b16 %v137
    %v177 = vpack.c.b16 %v162, %v161
    %v178 = vpack.c.b16 %v164, %v163
    %v179 = vpack.c.b16 %v166, %v165
    %v180 = vpack.c.b16 %v168, %v167
    %v181 = vpack.c.b16 %v170, %v169
    %v182 = vpack.c.b16 %v172, %v171
    %v183 = vpack.c.b16 %v174, %v173
    %v184 = vpack.c.b16 %v176, %v175
    %193 = vmatprep.subr.bf16.mxu0 0
    %194 = vmatpush1.bf16.msra.mxu0 %v177
    %195 = vmatprep.subr.bf16.mxu0 0
    %196 = vmatpush1.bf16.msra.mxu0 %v178
    %197 = vmatprep.subr.bf16.mxu0 0
    %198 = vmatpush1.bf16.msra.mxu0 %v179
    %199 = vmatprep.subr.bf16.mxu0 0
    %200 = vmatpush1.bf16.msra.mxu0 %v180
    %201 = vmatprep.subr.bf16.mxu0 0
    %202 = vmatpush1.bf16.msra.mxu0 %v181
    %203 = vmatprep.subr.bf16.mxu0 0
    %204 = vmatpush1.bf16.msra.mxu0 %v182
    %205 = vmatprep.subr.bf16.mxu0 0
    %206 = vmatpush1.bf16.msra.mxu0 %v183
    %207 = vmatprep.subr.bf16.mxu0 0
    %208 = vmatpush1.bf16.msra.mxu0 %v184
    %209 = vmatprep.subr.bf16.mxu0 0
    %210 = vmatpush1.bf16.msra.mxu0 0
    %211 = vmatprep.subr.bf16.mxu0 0
    %212 = vmatpush1.bf16.msra.mxu0 0
    %213 = vmatprep.subr.bf16.mxu0 0
    %214 = vmatpush1.bf16.msra.mxu0 0
    %215 = vmatprep.subr.bf16.mxu0 0
    %216 = vmatpush1.bf16.msra.mxu0 0
    %217 = vmatprep.subr.bf16.mxu0 0
    %218 = vmatpush1.bf16.msra.mxu0 0
    %219 = vmatprep.subr.bf16.mxu0 0
    %220 = vmatpush1.bf16.msra.mxu0 0
    %221 = vmatprep.subr.bf16.mxu0 0
    %222 = vmatpush1.bf16.msra.mxu0 0
    %223 = vmatprep.subr.bf16.mxu0 0
    %224 = vmatpush1.bf16.msra.mxu0 0
    %225 = vmatprep.mubr.bf16.mxu0 0
    %226 = vmatmul.mubr.bf16.gmra.mrb[0].mxu0 %v121
    %v227 = vpop.f32.mrb[0].mxu0
    %v228 = vadd.f32 %v143, %v227
    %v229 = vpop.f32.mrb[0].mxu0
    %v230 = vpop.f32.mrb[0].mxu0
    %v231 = vpop.f32.mrb[0].mxu0
    %232 = vdwg.mxu0
    %v233 = vsub.f32 0.0, %v228
    %v234 = vmul.f32 %v233, 1.442695
    %v235 = vpow.pop %v234
    %v236 = vadd.f32 %v235, 1.0
    %v237 = vrcp.pop %v236
    %vm238 = vcmask 7168
    %239 = vst.msk [vmem:[%s5] sm:$0xff] %vm238, %v237
    // Predicated region
    $region34: #{tpu_custom_call.1} parent=1 // pred_check
      _
    $region35: #{tpu_custom_call.1} parent=1 // pred_check_branch
      %241 = sbr.rel (0) target = $region37
    $region36: #{tpu_custom_call.1} parent=1 // pred_region
      _
    $region37: #{tpu_custom_call.1} parent=1 // pred_fallthru
      _
    // Predicated region
    $region38: #{tpu_custom_call.1} parent=1 // pred_check
      _
    $region39: #{tpu_custom_call.1} parent=1 // pred_check_branch
      %243 = sbr.rel (0) target = $region41
    $region40: #{tpu_custom_call.1} parent=1 // pred_region
      _
    $region41: #{tpu_custom_call.1} parent=1 // pred_fallthru
      _
    %244 = vsyncpa [#allocation3], 1
    %245 = vsyncpa [#allocation5], 1

// kernel: tpu_custom_call.1
$region0: #{tpu_custom_call.1}
  #allocation0 [shape = 'u32[]', space=smem, size = 0x4, offset = 0x4, fixed_abs, tag = 'smem constant byte address 0x4 - core index']
  #allocation1 [shape = 'u32[144,128]{1,0:T(1,128)}', space=vmem, size = 0x12000, scoped, tag = 'internal scratch']
  %s0 = inlined_call_operand.hbm [shape: f32[8,8], index: 0, kind: input, shape index: {}]
  %s1 = inlined_call_operand.hbm [shape: bf16[8,128], index: 1, kind: input, shape index: {}]
  %s2 = inlined_call_operand.vmem [shape: f32[1,128], index: 2, kind: input, shape index: {}]
  %s3 = inlined_call_operand.hbm [shape: bf16[128,128], index: 3, kind: input, shape index: {}]
  %s4 = inlined_call_operand.vmem [shape: f32[1,128], index: 4, kind: input, shape index: {}]
  %s5 = inlined_call_operand.vmem [shape: f32[8,1], index: 5, kind: output, shape index: {}]
  %s6 = sld [smem:[#allocation0]]
  $region42: #{tpu_custom_call.1} parent=0
    _
  %s8 = ssub.s32 1, %s6
  %s9 = scalar_select 0, %s8, %s6
  $region1: #{tpu_custom_call.1} parent=0
    #allocation2 [shape = 'u8[4096]{0}', space=vmem, size = 0x1000, scoped, tag = 'input window, operand 0, single buffered']
    #allocation3 [shape = 's32[1]{0}', space=sflag, size = 0x4, scoped, tag = 'scoped memory for tpu_custom_call.1']
    #allocation4 [shape = 'u8[2048]{0}', space=vmem, size = 0x800, scoped, tag = 'input window, operand 1, single buffered']
    #allocation5 [shape = 's32[1]{0}', space=sflag, size = 0x4, scoped, tag = 'scoped memory for tpu_custom_call.1']
    #allocation6 [shape = 'u8[32768]{0}', space=vmem, size = 0x8000, scoped, tag = 'input window, operand 3, single buffered']
    %10 = vsyncpa [#allocation3], 0
    %11 = vsyncpa [#allocation5], 0
    // Predicated region
    $region2: #{tpu_custom_call.1} parent=1 // pred_check
      _
    $region3: #{tpu_custom_call.1} parent=1 // pred_check_branch
      %13 = sbr.rel (0) target = $region5
    $region4: #{tpu_custom_call.1} parent=1 // pred_region
      %s15 = ssub.s32 128, 128
      %16 = vsyncadd [#allocation3], %s15
      %s18 = sshll.u32 [#allocation2], 4
      %s19 = int_to_ptr.vmem [resolvable:$true] %s18
      %21 = dma.hbm_to_vmem [thread:$0]  %s0, 128, %s19, [#allocation3]
    $region5: #{tpu_custom_call.1} parent=1 // pred_fallthru
      _
    // Predicated region
    $region6: #{tpu_custom_call.1} parent=1 // pred_check
      _
    $region7: #{tpu_custom_call.1} parent=1 // pred_check_branch
      %23 = sbr.rel (0) target = $region9
    $region8: #{tpu_custom_call.1} parent=1 // pred_region
      %s25 = ssub.s32 64, 64
      %26 = vsyncadd [#allocation5], %s25
      %s28 = sshll.u32 [#allocation4], 4
      %s29 = int_to_ptr.vmem [resolvable:$true] %s28
      %31 = dma.hbm_to_vmem [thread:$0]  %s1, 64, %s29, [#allocation5]
    $region9: #{tpu_custom_call.1} parent=1 // pred_fallthru
      _
    // Predicated region
    $region10: #{tpu_custom_call.1} parent=1 // pred_check
      _
    $region11: #{tpu_custom_call.1} parent=1 // pred_check_branch
      %33 = sbr.rel (0) target = $region13
    $region12: #{tpu_custom_call.1} parent=1 // pred_region
      _
    $region13: #{tpu_custom_call.1} parent=1 // pred_fallthru
      _
    // Predicated region
    $region14: #{tpu_custom_call.1} parent=1 // pred_check
      _
    $region15: #{tpu_custom_call.1} parent=1 // pred_check_branch
      %35 = sbr.rel (0) target = $region17
    $region16: #{tpu_custom_call.1} parent=1 // pred_region
      %s37 = ssub.s32 1024, 1024
      %38 = vsyncadd [#allocation5], %s37
      %s39 = sshll.u32 [#allocation6], 4
      %s40 = int_to_ptr.vmem [resolvable:$true] %s39
      %45 = dma.hbm_to_vmem [thread:$0]  %s3, 1024, %s40, [#allocation5], 64, 64, 4
    $region17: #{tpu_custom_call.1} parent=1 // pred_fallthru
      _
    // Predicated region
    $region18: #{tpu_custom_call.1} parent=1 // pred_check
      _
    $region19: #{tpu_custom_call.1} parent=1 // pred_check_branch
      %47 = sbr.rel (0) target = $region21
    $region20: #{tpu_custom_call.1} parent=1 // pred_region
      _
    $region21: #{tpu_custom_call.1} parent=1 // pred_fallthru
      _
    // Predicated region
    $region22: #{tpu_custom_call.1} parent=1 // pred_check
      _
    $region23: #{tpu_custom_call.1} parent=1 // pred_check_branch
      %49 = sbr.rel (0) target = $region25
    $region24: #{tpu_custom_call.1} parent=1 // pred_region
      %50 = dma.done [#allocation3], 128
    $region25: #{tpu_custom_call.1} parent=1 // pred_fallthru
      _
    // Predicated region
    $region26: #{tpu_custom_call.1} parent=1 // pred_check
      _
    $region27: #{tpu_custom_call.1} parent=1 // pred_check_branch
      %52 = sbr.rel (0) target = $region29
    $region28: #{tpu_custom_call.1} parent=1 // pred_region
      %53 = dma.done [#allocation5], 64
    $region29: #{tpu_custom_call.1} parent=1 // pred_fallthru
      _
    // Predicated region
    $region30: #{tpu_custom_call.1} parent=1 // pred_check
      _
    $region31: #{tpu_custom_call.1} parent=1 // pred_check_branch
      %55 = sbr.rel (0) target = $region33
    $region32: #{tpu_custom_call.1} parent=1 // pred_region
      %56 = dma.done [#allocation5], 1024
    $region33: #{tpu_custom_call.1} parent=1 // pred_fallthru
      _
    %v58 = vld [vmem:[#allocation2] sm:$0xff]
    %v59 = vpack.c.bf16 %v58, %v58
    %v60 = vld [vmem:[#allocation4] sm:$0xf]
    %v61 = vld [vmem:[%s2] sm:$0x1]
    %v63 = vlaneseq
    %v64 = vshrl.u32 %v63, 7
    %v65 = vsub.s32 0, %v64
    %v66 = vrot.slane %v61, %v65
    %vm68 = vcmask 64512
    %v70 = vsel %vm68, %v59, 0
    %vm72 = vcmask 1043456
    %v74 = vsel %vm72, %v60, 0
    %76 = vmatprep.subr.bf16.mxu0 0
    %77 = vmatpush1.bf16.msra.mxu0 %v74
    %78 = vmatprep.subr.bf16.mxu0 0
    %79 = vmatpush1.bf16.msra.mxu0 0
    %80 = vmatprep.subr.bf16.mxu0 0
    %81 = vmatpush1.bf16.msra.mxu0 0
    %82 = vmatprep.subr.bf16.mxu0 0
    %83 = vmatpush1.bf16.msra.mxu0 0
    %84 = vmatprep.subr.bf16.mxu0 0
    %85 = vmatpush1.bf16.msra.mxu0 0
    %86 = vmatprep.subr.bf16.mxu0 0
    %87 = vmatpush1.bf16.msra.mxu0 0
    %88 = vmatprep.subr.bf16.mxu0 0
    %89 = vmatpush1.bf16.msra.mxu0 0
    %90 = vmatprep.subr.bf16.mxu0 0
    %91 = vmatpush1.bf16.msra.mxu0 0
    %92 = vmatprep.subr.bf16.mxu0 0
    %93 = vmatpush1.bf16.msra.mxu0 0
    %94 = vmatprep.subr.bf16.mxu0 0
    %95 = vmatpush1.bf16.msra.mxu0 0
    %96 = vmatprep.subr.bf16.mxu0 0
    %97 = vmatpush1.bf16.msra.mxu0 0
    %98 = vmatprep.subr.bf16.mxu0 0
    %99 = vmatpush1.bf16.msra.mxu0 0
    %100 = vmatprep.subr.bf16.mxu0 0
    %101 = vmatpush1.bf16.msra.mxu0 0
    %102 = vmatprep.subr.bf16.mxu0 0
    %103 = vmatpush1.bf16.msra.mxu0 0
    %104 = vmatprep.subr.bf16.mxu0 0
    %105 = vmatpush1.bf16.msra.mxu0 0
    %106 = vmatprep.subr.bf16.mxu0 0
    %107 = vmatpush1.bf16.msra.mxu0 0
    %108 = vmatprep.mubr.bf16.mxu0 0
    %109 = vmatmul.mubr.bf16.gmra.mrb[0].mxu0 %v70
    %v110 = vpop.f32.mrb[0].mxu0
    %v111 = vadd.f32 %v66, %v110
    %v112 = vpop.f32.mrb[0].mxu0
    %v113 = vpop.f32.mrb[0].mxu0
    %v114 = vpop.f32.mrb[0].mxu0
    %115 = vdwg.mxu0
    %v116 = vsub.f32 0.0, %v111
    %v117 = vmul.f32 %v116, 1.442695
    %v118 = vpow.pop %v117
    %v119 = vadd.f32 %v118, 1.0
    %v120 = vrcp.pop %v119
    %v121 = vpack.c.bf16 %v120, %v120
    %v122 = vld [vmem:[#allocation6] sm:$0xf]
    %v123 = vld [vmem:[#allocation6 + $0x4] sm:$0xf]
    %v124 = vld [vmem:[#allocation6 + $0x8] sm:$0xf]
    %v125 = vld [vmem:[#allocation6 + $0xc] sm:$0xf]
    %v126 = vld [vmem:[#allocation6 + $0x10] sm:$0xf]
    %v127 = vld [vmem:[#allocation6 + $0x14] sm:$0xf]
    %v128 = vld [vmem:[#allocation6 + $0x18] sm:$0xf]
    %v129 = vld [vmem:[#allocation6 + $0x1c] sm:$0xf]
    %v130 = vld [vmem:[#allocation6 + $0x20] sm:$0xf]
    %v131 = vld [vmem:[#allocation6 + $0x24] sm:$0xf]
    %v132 = vld [vmem:[#allocation6 + $0x28] sm:$0xf]
    %v133 = vld [vmem:[#allocation6 + $0x2c] sm:$0xf]
    %v134 = vld [vmem:[#allocation6 + $0x30] sm:$0xf]
    %v135 = vld [vmem:[#allocation6 + $0x34] sm:$0xf]
    %v136 = vld [vmem:[#allocation6 + $0x38] sm:$0xf]
    %v137 = vld [vmem:[#allocation6 + $0x3c] sm:$0xf]
    %v138 = vld [vmem:[%s4] sm:$0x1]
    %v140 = vlaneseq
    %v141 = vshrl.u32 %v140, 7
    %v142 = vsub.s32 0, %v141
    %v143 = vrot.slane %v138, %v142
    %v161 = vunpack.c.l.b16 %v122
    %v162 = vunpack.c.l.b16 %v123
    %v163 = vunpack.c.l.b16 %v124
    %v164 = vunpack.c.l.b16 %v125
    %v165 = vunpack.c.l.b16 %v126
    %v166 = vunpack.c.l.b16 %v127
    %v167 = vunpack.c.l.b16 %v128
    %v168 = vunpack.c.l.b16 %v129
    %v169 = vunpack.c.l.b16 %v130
    %v170 = vunpack.c.l.b16 %v131
    %v171 = vunpack.c.l.b16 %v132
    %v172 = vunpack.c.l.b16 %v133
    %v173 = vunpack.c.l.b16 %v134
    %v174 = vunpack.c.l.b16 %v135
    %v175 = vunpack.c.l.b16 %v136
    %v176 = vunpack.c.l.b16 %v137
    %v177 = vpack.c.b16 %v162, %v161
    %v178 = vpack.c.b16 %v164, %v163
    %v179 = vpack.c.b16 %v166, %v165
    %v180 = vpack.c.b16 %v168, %v167
    %v181 = vpack.c.b16 %v170, %v169
    %v182 = vpack.c.b16 %v172, %v171
    %v183 = vpack.c.b16 %v174, %v173
    %v184 = vpack.c.b16 %v176, %v175
    %193 = vmatprep.subr.bf16.mxu0 0
    %194 = vmatpush1.bf16.msra.mxu0 %v177
    %195 = vmatprep.subr.bf16.mxu0 0
    %196 = vmatpush1.bf16.msra.mxu0 %v178
    %197 = vmatprep.subr.bf16.mxu0 0
    %198 = vmatpush1.bf16.msra.mxu0 %v179
    %199 = vmatprep.subr.bf16.mxu0 0
    %200 = vmatpush1.bf16.msra.mxu0 %v180
    %201 = vmatprep.subr.bf16.mxu0 0
    %202 = vmatpush1.bf16.msra.mxu0 %v181
    %203 = vmatprep.subr.bf16.mxu0 0
    %204 = vmatpush1.bf16.msra.mxu0 %v182
    %205 = vmatprep.subr.bf16.mxu0 0
    %206 = vmatpush1.bf16.msra.mxu0 %v183
    %207 = vmatprep.subr.bf16.mxu0 0
    %208 = vmatpush1.bf16.msra.mxu0 %v184
    %209 = vmatprep.subr.bf16.mxu0 0
    %210 = vmatpush1.bf16.msra.mxu0 0
    %211 = vmatprep.subr.bf16.mxu0 0
    %212 = vmatpush1.bf16.msra.mxu0 0
    %213 = vmatprep.subr.bf16.mxu0 0
    %214 = vmatpush1.bf16.msra.mxu0 0
    %215 = vmatprep.subr.bf16.mxu0 0
    %216 = vmatpush1.bf16.msra.mxu0 0
    %217 = vmatprep.subr.bf16.mxu0 0
    %218 = vmatpush1.bf16.msra.mxu0 0
    %219 = vmatprep.subr.bf16.mxu0 0
    %220 = vmatpush1.bf16.msra.mxu0 0
    %221 = vmatprep.subr.bf16.mxu0 0
    %222 = vmatpush1.bf16.msra.mxu0 0
    %223 = vmatprep.subr.bf16.mxu0 0
    %224 = vmatpush1.bf16.msra.mxu0 0
    %225 = vmatprep.mubr.bf16.mxu0 0
    %226 = vmatmul.mubr.bf16.gmra.mrb[0].mxu0 %v121
    %v227 = vpop.f32.mrb[0].mxu0
    %v228 = vadd.f32 %v143, %v227
    %v229 = vpop.f32.mrb[0].mxu0
    %v230 = vpop.f32.mrb[0].mxu0
    %v231 = vpop.f32.mrb[0].mxu0
    %232 = vdwg.mxu0
    %v233 = vsub.f32 0.0, %v228
    %v234 = vmul.f32 %v233, 1.442695
    %v235 = vpow.pop %v234
    %v236 = vadd.f32 %v235, 1.0
    %v237 = vrcp.pop %v236
    %vm238 = vcmask 7168
    %239 = vst.msk [vmem:[%s5] sm:$0xff] %vm238, %v237
    // Predicated region
    $region34: #{tpu_custom_call.1} parent=1 // pred_check
      _
    $region35: #{tpu_custom_call.1} parent=1 // pred_check_branch
      %241 = sbr.rel (0) target = $region37
    $region36: #{tpu_custom_call.1} parent=1 // pred_region
      _
    $region37: #{tpu_custom_call.1} parent=1 // pred_fallthru
      _
    // Predicated region
    $region38: #{tpu_custom_call.1} parent=1 // pred_check
      _
    $region39: #{tpu_custom_call.1} parent=1 // pred_check_branch
      %243 = sbr.rel (0) target = $region41
    $region40: #{tpu_custom_call.1} parent=1 // pred_region
      _
    $region41: #{tpu_custom_call.1} parent=1 // pred_fallthru
      _
    %244 = vsyncpa [#allocation3], 1
    %245 = vsyncpa [#allocation5], 1

</llo_original>
